<compile_context>
chip_gen: v7x
topology: tpu7x:2x2x1
jax: 0.10.0
libtpu: 0.0.40
codegen_flags: <defaults>
</compile_context>

<pallas_src>
import functools
import math

import jax
import jax.numpy as jnp
from jax.experimental import pallas as pl
from jax.experimental.pallas import tpu as pltpu


_MASK_VALUE = -1e30  # large negative instead of -inf: tile/padding safe, exp() -> 0


def _mhsa_kernel(q_ref, k_ref, v_ref, wo_ref, bo_ref, o_ref, *,
                 scale, causal, mm_dtype):
    """One grid step == (batch b, query block qi); static loop over all heads.

    q_ref  : (H, tq, D)  query rows of this block, head-major
    k_ref  : (H, S, D)   full keys of this batch element
    v_ref  : (H, S, D)   full values of this batch element
    wo_ref : (E, E)      out_proj.weight.T  (x @ W form), loaded once
    bo_ref : (1, E)      out_proj bias
    o_ref  : (tq, E)     output block
    """
    H, tq, D = q_ref.shape
    S = k_ref.shape[1]

    # Causal additive bias: depends only on the query block, built once per
    # grid step and reused by every head (hoisted out of the head loop).
    bias = None
    if causal:
        q_start = pl.program_id(1) * tq
        row = q_start + jax.lax.broadcasted_iota(jnp.int32, (tq, S), 0)
        col = jax.lax.broadcasted_iota(jnp.int32, (tq, S), 1)
        bias = jnp.where(col > row, jnp.float32(_MASK_VALUE), jnp.float32(0.0))

    head_outs = []
    for h in range(H):                                       # static unroll
        # Fold 1/sqrt(D) into q: tq*D multiplies instead of tq*S.
        qh = (q_ref[h] * scale).astype(mm_dtype)             # (tq, D)
        kh = k_ref[h].astype(mm_dtype)                       # (S, D)
        vh = v_ref[h].astype(mm_dtype)                       # (S, D)

        # Scores via NT dot_general (contract last dims) -> no materialized k^T.
        s = jax.lax.dot_general(qh, kh, (((1,), (1,)), ((), ())),
                                preferred_element_type=jnp.float32)  # (tq, S)
        if causal:
            s = s + bias

        # Numerically stable softmax; normalisation applied after PV (tq*D
        # multiplies instead of tq*S), exact division for parity with torch.
        m = jnp.max(s, axis=-1, keepdims=True)
        p = jnp.exp(s - m)
        l = jnp.sum(p, axis=-1, keepdims=True)
        oh = jnp.dot(p.astype(mm_dtype), vh,
                     preferred_element_type=jnp.float32)     # (tq, D)
        head_outs.append(oh / l)

    # Single full-width out_proj: (tq, E) x (E, E) -> much better MXU
    # utilisation than H separate rank-D accumulations.
    o_cat = jnp.concatenate(head_outs, axis=-1)              # (tq, E) f32
    out = jnp.dot(o_cat.astype(mm_dtype), wo_ref[...],
                  preferred_element_type=jnp.float32) + bo_ref[...]
    o_ref[...] = out.astype(o_ref.dtype)


def _vmem_capacity_bytes():
    try:
        info = pltpu.get_tpu_info()
        cap = getattr(info, "vmem_capacity_bytes", None)
        if cap:
            return int(cap)
    except Exception:
        pass
    return 64 * 1024 * 1024  # conservative default (v7x per-TensorCore)


def _vmem_need_bytes(tq, S, E, H, itemsize):
    D = E // H
    # Pipeline blocks (double-buffered by default).
    blocks = itemsize * (2 * H * tq * D          # q
                         + 4 * H * S * D         # k + v
                         + 2 * tq * E            # out
                         + 2 * E * E             # out_proj weight
                         + 2 * E)                # out_proj bias
    # In-kernel f32 intermediates: scores + probs + mask bias + head outs + cat.
    inter = 4 * (3 * tq * S + 2 * tq * E)
    return blocks + inter


def _select_q_block(S, E, H, itemsize, B, vmem_cap):
    """Budget-derived query-block size (divides S, multiple of 8 or == S)."""
    budget = int(0.6 * vmem_cap)
    cands = [S] + [c for c in (1024, 512, 256, 128, 64, 32, 16, 8)
                   if c < S and S % c == 0]
    tq = cands[-1]
    for c in cands:
        if _vmem_need_bytes(c, S, E, H, itemsize) <= budget:
            tq = c
            break
    # Guarantee >=2 parallel blocks for the two v7x TensorCores when batch==1.
    if B == 1 and S // tq < 2:
        for c in cands:
            if c < S and S // c >= 2:
                tq = c
                break
    return tq


def self_attention_pallas(x, w_in, b_in, w_out, b_out, n_heads,
                          causal_mask=False, q_block=None):
    """x: (B, S, E); w_in: (3E, E), w_out: (E, E) in PyTorch nn.Linear layout."""
    B, S, E = x.shape
    H = int(n_heads)
    assert E % H == 0, "embd_dim must be divisible by n_heads"
    D = E // H

    dtype = x.dtype
    mm_dtype = jnp.bfloat16 if dtype == jnp.bfloat16 else jnp.float32
    itemsize = jnp.dtype(dtype).itemsize

    w_in = jnp.asarray(w_in, dtype)                 # (3E, E)
    b_in = jnp.asarray(b_in, dtype)                 # (3E,)
    w_out_t = jnp.asarray(w_out, dtype).T           # (E, E): out = h @ w_out_t
    b_out2 = jnp.asarray(b_out, dtype).reshape(1, E)

    # --- in_proj hoisted out of the kernel: one XLA matmul, no redundancy ---
    qkv = jnp.dot(x, w_in.T) + b_in                 # (B, S, 3E)
    q, k, v = jnp.split(qkv, 3, axis=-1)

    def to_heads(t):                                # (B, S, E) -> (B, H, S, D)
        return t.reshape(B, S, H, D).transpose(0, 2, 1, 3)

    qh, kh, vh = to_heads(q), to_heads(k), to_heads(v)

    # --- tiling / VMEM sizing derived from the actual chip ---
    vmem_cap = _vmem_capacity_bytes()
    if q_block is None:
        tq = _select_q_block(S, E, H, itemsize, B, vmem_cap)
    else:
        tq = int(q_block)
    assert S % tq == 0, "q_block must divide seq_len"
    num_q = S // tq

    need = _vmem_need_bytes(tq, S, E, H, itemsize)
    vmem_limit = int(min(0.9 * vmem_cap,
                         max(32 * 1024 * 1024, 1.5 * need)))

    kernel = functools.partial(
        _mhsa_kernel,
        scale=1.0 / math.sqrt(D),
        causal=bool(causal_mask),
        mm_dtype=mm_dtype)

    cost = pl.CostEstimate(
        flops=int(4 * B * H * S * S * D            # QK^T + PV
                  + 2 * B * S * E * E),            # out_proj
        transcendentals=int(B * H * S * S),
        bytes_accessed=int(itemsize * (4 * B * S * E + E * E + E)))

    grid = (B, num_q)

    return pl.pallas_call(
        kernel,
        out_shape=jax.ShapeDtypeStruct((B, S, E), dtype),
        grid_spec=pltpu.PrefetchScalarGridSpec(
            num_scalar_prefetch=0,
            grid=grid,
            in_specs=[
                pl.BlockSpec((None, H, tq, D), lambda b, qi: (b, 0, qi, 0)),  # q
                pl.BlockSpec((None, H, S, D), lambda b, qi: (b, 0, 0, 0)),    # k
                pl.BlockSpec((None, H, S, D), lambda b, qi: (b, 0, 0, 0)),    # v
                pl.BlockSpec((E, E), lambda b, qi: (0, 0)),                   # Wo^T
                pl.BlockSpec((1, E), lambda b, qi: (0, 0)),                   # b_out
            ],
            out_specs=pl.BlockSpec((None, tq, E), lambda b, qi: (b, qi, 0)),
        ),
        compiler_params=pltpu.CompilerParams(
            dimension_semantics=("parallel", "parallel"),
            vmem_limit_bytes=vmem_limit),
        cost_estimate=cost,
    )(qh, kh, vh, w_out_t, b_out2)


def self_attention_reference(x, w_in, b_in, w_out, b_out, n_heads, causal_mask=False):
    """Pure-JAX reference mirroring the PyTorch forward exactly."""
    B, S, E = x.shape
    D = E // n_heads
    qkv = x @ w_in.T + b_in                       # (B, S, 3E)
    q, k, v = jnp.split(qkv, 3, axis=-1)
    q = q.reshape(B, S, n_heads, D).transpose(0, 2, 1, 3)
    k = k.reshape(B, S, n_heads, D).transpose(0, 2, 1, 3)
    v = v.reshape(B, S, n_heads, D).transpose(0, 2, 1, 3)
    w = q @ k.transpose(0, 1, 3, 2)
    if causal_mask:
        mask = jnp.triu(jnp.ones((S, S), dtype=bool), 1)
        w = jnp.where(mask, -jnp.inf, w)
    w = w / math.sqrt(D)
    w = jax.nn.softmax(w, axis=-1)
    out = (w @ v).transpose(0, 2, 1, 3).reshape(B, S, E)
    return out @ w_out.T + b_out


if __name__ == "__main__":
    B, S, E, H = 2, 8, 32, 4

    key = jax.random.PRNGKey(0)
    kx, kw1, kb1, kw2, kb2 = jax.random.split(key, 5)

    x = jax.random.normal(kx, (B, S, E), dtype=jnp.float32)
    # nn.Linear shapes: weight (out, in), bias (out,)
    w_in = jax.random.normal(kw1, (3 * E, E), dtype=jnp.float32) * 0.05
    b_in = jax.random.normal(kb1, (3 * E,), dtype=jnp.float32) * 0.05
    w_out = jax.random.normal(kw2, (E, E), dtype=jnp.float32) * 0.05
    b_out = jax.random.normal(kb2, (E,), dtype=jnp.float32) * 0.05

    ok = True
    for causal in (False, True):
        out = self_attention_pallas(x, w_in, b_in, w_out, b_out, n_heads=H,
                                    causal_mask=causal)
        out = jax.block_until_ready(out)
        ref = self_attention_reference(x, w_in, b_in, w_out, b_out, n_heads=H,
                                       causal_mask=causal)
        assert out.shape == (B, S, E)
        if not jnp.allclose(out, ref, atol=2e-3, rtol=2e-3):
            ok = False
            print("mismatch vs reference (causal=%s), max err %e"
                  % (causal, float(jnp.max(jnp.abs(out - ref)))))

    assert ok, "kernel output mismatch"
    print("KERNEL_OK")
</pallas_src>

<mosaic_0001>
module attributes {stable_mosaic.version = 11 : i64} {
  func.func @_mhsa_kernel(%arg0: i32, %arg1: i32, %arg2: memref<1x4x8x8xf32, #tpu.memory_space<vmem>>, %arg3: memref<1x4x8x8xf32, #tpu.memory_space<vmem>>, %arg4: memref<1x4x8x8xf32, #tpu.memory_space<vmem>>, %arg5: memref<32x32xf32, #tpu.memory_space<vmem>>, %arg6: memref<1x32xf32, #tpu.memory_space<vmem>>, %arg7: memref<1x8x32xf32, #tpu.memory_space<vmem>>) attributes {dimension_semantics = [#tpu.dimension_semantics<parallel>, #tpu.dimension_semantics<parallel>], iteration_bounds = array<i64: 2, 1>, scalar_prefetch = 0 : i64, scratch_operands = 0 : i64, tpu.core_type = #tpu.core_type<tc>, window_params = [{transform_indices = @transform_0, window_bounds = array<i64: 1, 4, 8, 8>}, {transform_indices = @transform_1, window_bounds = array<i64: 1, 4, 8, 8>}, {transform_indices = @transform_2, window_bounds = array<i64: 1, 4, 8, 8>}, {pipeline_mode = #tpu.pipeline_mode<synchronous>, transform_indices = @transform_3, window_bounds = array<i64: 32, 32>}, {pipeline_mode = #tpu.pipeline_mode<synchronous>, transform_indices = @transform_4, window_bounds = array<i64: 1, 32>}, {transform_indices = @transform_5, window_bounds = array<i64: 1, 8, 32>}]} {
    %c0 = arith.constant 0 : index
    %c0_0 = arith.constant 0 : index
    %c0_1 = arith.constant 0 : index
    %c0_2 = arith.constant 0 : index
    %0 = vector.load %arg2[%c0, %c0_0, %c0_1, %c0_2] : memref<1x4x8x8xf32, #tpu.memory_space<vmem>>, vector<1x1x8x8xf32>
    %1 = vector.shape_cast %0 : vector<1x1x8x8xf32> to vector<8x8xf32>
    %cst = arith.constant 0.353553385 : f32
    %2 = vector.broadcast %cst : f32 to vector<8x8xf32>
    %3 = arith.mulf %1, %2 : vector<8x8xf32>
    %c0_3 = arith.constant 0 : index
    %c0_4 = arith.constant 0 : index
    %c0_5 = arith.constant 0 : index
    %c0_6 = arith.constant 0 : index
    %4 = vector.load %arg3[%c0_3, %c0_4, %c0_5, %c0_6] : memref<1x4x8x8xf32, #tpu.memory_space<vmem>>, vector<1x1x8x8xf32>
    %5 = vector.shape_cast %4 : vector<1x1x8x8xf32> to vector<8x8xf32>
    %c0_7 = arith.constant 0 : index
    %c0_8 = arith.constant 0 : index
    %c0_9 = arith.constant 0 : index
    %c0_10 = arith.constant 0 : index
    %6 = vector.load %arg4[%c0_7, %c0_8, %c0_9, %c0_10] : memref<1x4x8x8xf32, #tpu.memory_space<vmem>>, vector<1x1x8x8xf32>
    %7 = vector.shape_cast %6 : vector<1x1x8x8xf32> to vector<8x8xf32>
    %cst_11 = arith.constant dense<0.000000e+00> : vector<8x8xf32>
    %8 = tpu.matmul %3, %5, %cst_11 {dimension_numbers = #tpu.dot_dimension_numbers<[1], [1], [0], [0], [0, 0, 1, 0], [], []>} : vector<8x8xf32>, vector<8x8xf32>, vector<8x8xf32> -> vector<8x8xf32>
    %cst_12 = arith.constant dense<0xFF800000> : vector<8xf32>
    %9 = vector.multi_reduction <maximumf>, %8, %cst_12 [1] : vector<8x8xf32> to vector<8xf32>
    %10 = vector.shape_cast %9 : vector<8xf32> to vector<8x1xf32>
    %11 = vector.broadcast %10 : vector<8x1xf32> to vector<8x8xf32>
    %12 = arith.subf %8, %11 : vector<8x8xf32>
    %13 = math.exp %12 : vector<8x8xf32>
    %cst_13 = arith.constant dense<0.000000e+00> : vector<8xf32>
    %14 = vector.multi_reduction <add>, %13, %cst_13 [1] : vector<8x8xf32> to vector<8xf32>
    %15 = vector.shape_cast %14 : vector<8xf32> to vector<8x1xf32>
    %cst_14 = arith.constant dense<0.000000e+00> : vector<8x8xf32>
    %16 = tpu.matmul %13, %7, %cst_14 {dimension_numbers = #tpu.dot_dimension_numbers<[1], [0], [0], [1], [0, 0, 1, 1], [], []>} : vector<8x8xf32>, vector<8x8xf32>, vector<8x8xf32> -> vector<8x8xf32>
    %17 = vector.broadcast %15 : vector<8x1xf32> to vector<8x8xf32>
    %18 = arith.divf %16, %17 : vector<8x8xf32>
    %c0_15 = arith.constant 0 : index
    %c1 = arith.constant 1 : index
    %c0_16 = arith.constant 0 : index
    %c0_17 = arith.constant 0 : index
    %19 = vector.load %arg2[%c0_15, %c1, %c0_16, %c0_17] : memref<1x4x8x8xf32, #tpu.memory_space<vmem>>, vector<1x1x8x8xf32>
    %20 = vector.shape_cast %19 : vector<1x1x8x8xf32> to vector<8x8xf32>
    %cst_18 = arith.constant 0.353553385 : f32
    %21 = vector.broadcast %cst_18 : f32 to vector<8x8xf32>
    %22 = arith.mulf %20, %21 : vector<8x8xf32>
    %c0_19 = arith.constant 0 : index
    %c1_20 = arith.constant 1 : index
    %c0_21 = arith.constant 0 : index
    %c0_22 = arith.constant 0 : index
    %23 = vector.load %arg3[%c0_19, %c1_20, %c0_21, %c0_22] : memref<1x4x8x8xf32, #tpu.memory_space<vmem>>, vector<1x1x8x8xf32>
    %24 = vector.shape_cast %23 : vector<1x1x8x8xf32> to vector<8x8xf32>
    %c0_23 = arith.constant 0 : index
    %c1_24 = arith.constant 1 : index
    %c0_25 = arith.constant 0 : index
    %c0_26 = arith.constant 0 : index
    %25 = vector.load %arg4[%c0_23, %c1_24, %c0_25, %c0_26] : memref<1x4x8x8xf32, #tpu.memory_space<vmem>>, vector<1x1x8x8xf32>
    %26 = vector.shape_cast %25 : vector<1x1x8x8xf32> to vector<8x8xf32>
    %cst_27 = arith.constant dense<0.000000e+00> : vector<8x8xf32>
    %27 = tpu.matmul %22, %24, %cst_27 {dimension_numbers = #tpu.dot_dimension_numbers<[1], [1], [0], [0], [0, 0, 1, 0], [], []>} : vector<8x8xf32>, vector<8x8xf32>, vector<8x8xf32> -> vector<8x8xf32>
    %cst_28 = arith.constant dense<0xFF800000> : vector<8xf32>
    %28 = vector.multi_reduction <maximumf>, %27, %cst_28 [1] : vector<8x8xf32> to vector<8xf32>
    %29 = vector.shape_cast %28 : vector<8xf32> to vector<8x1xf32>
    %30 = vector.broadcast %29 : vector<8x1xf32> to vector<8x8xf32>
    %31 = arith.subf %27, %30 : vector<8x8xf32>
    %32 = math.exp %31 : vector<8x8xf32>
    %cst_29 = arith.constant dense<0.000000e+00> : vector<8xf32>
    %33 = vector.multi_reduction <add>, %32, %cst_29 [1] : vector<8x8xf32> to vector<8xf32>
    %34 = vector.shape_cast %33 : vector<8xf32> to vector<8x1xf32>
    %cst_30 = arith.constant dense<0.000000e+00> : vector<8x8xf32>
    %35 = tpu.matmul %32, %26, %cst_30 {dimension_numbers = #tpu.dot_dimension_numbers<[1], [0], [0], [1], [0, 0, 1, 1], [], []>} : vector<8x8xf32>, vector<8x8xf32>, vector<8x8xf32> -> vector<8x8xf32>
    %36 = vector.broadcast %34 : vector<8x1xf32> to vector<8x8xf32>
    %37 = arith.divf %35, %36 : vector<8x8xf32>
    %c0_31 = arith.constant 0 : index
    %c2 = arith.constant 2 : index
    %c0_32 = arith.constant 0 : index
    %c0_33 = arith.constant 0 : index
    %38 = vector.load %arg2[%c0_31, %c2, %c0_32, %c0_33] : memref<1x4x8x8xf32, #tpu.memory_space<vmem>>, vector<1x1x8x8xf32>
    %39 = vector.shape_cast %38 : vector<1x1x8x8xf32> to vector<8x8xf32>
    %cst_34 = arith.constant 0.353553385 : f32
    %40 = vector.broadcast %cst_34 : f32 to vector<8x8xf32>
    %41 = arith.mulf %39, %40 : vector<8x8xf32>
    %c0_35 = arith.constant 0 : index
    %c2_36 = arith.constant 2 : index
    %c0_37 = arith.constant 0 : index
    %c0_38 = arith.constant 0 : index
    %42 = vector.load %arg3[%c0_35, %c2_36, %c0_37, %c0_38] : memref<1x4x8x8xf32, #tpu.memory_space<vmem>>, vector<1x1x8x8xf32>
    %43 = vector.shape_cast %42 : vector<1x1x8x8xf32> to vector<8x8xf32>
    %c0_39 = arith.constant 0 : index
    %c2_40 = arith.constant 2 : index
    %c0_41 = arith.constant 0 : index
    %c0_42 = arith.constant 0 : index
    %44 = vector.load %arg4[%c0_39, %c2_40, %c0_41, %c0_42] : memref<1x4x8x8xf32, #tpu.memory_space<vmem>>, vector<1x1x8x8xf32>
    %45 = vector.shape_cast %44 : vector<1x1x8x8xf32> to vector<8x8xf32>
    %cst_43 = arith.constant dense<0.000000e+00> : vector<8x8xf32>
    %46 = tpu.matmul %41, %43, %cst_43 {dimension_numbers = #tpu.dot_dimension_numbers<[1], [1], [0], [0], [0, 0, 1, 0], [], []>} : vector<8x8xf32>, vector<8x8xf32>, vector<8x8xf32> -> vector<8x8xf32>
    %cst_44 = arith.constant dense<0xFF800000> : vector<8xf32>
    %47 = vector.multi_reduction <maximumf>, %46, %cst_44 [1] : vector<8x8xf32> to vector<8xf32>
    %48 = vector.shape_cast %47 : vector<8xf32> to vector<8x1xf32>
    %49 = vector.broadcast %48 : vector<8x1xf32> to vector<8x8xf32>
    %50 = arith.subf %46, %49 : vector<8x8xf32>
    %51 = math.exp %50 : vector<8x8xf32>
    %cst_45 = arith.constant dense<0.000000e+00> : vector<8xf32>
    %52 = vector.multi_reduction <add>, %51, %cst_45 [1] : vector<8x8xf32> to vector<8xf32>
    %53 = vector.shape_cast %52 : vector<8xf32> to vector<8x1xf32>
    %cst_46 = arith.constant dense<0.000000e+00> : vector<8x8xf32>
    %54 = tpu.matmul %51, %45, %cst_46 {dimension_numbers = #tpu.dot_dimension_numbers<[1], [0], [0], [1], [0, 0, 1, 1], [], []>} : vector<8x8xf32>, vector<8x8xf32>, vector<8x8xf32> -> vector<8x8xf32>
    %55 = vector.broadcast %53 : vector<8x1xf32> to vector<8x8xf32>
    %56 = arith.divf %54, %55 : vector<8x8xf32>
    %c0_47 = arith.constant 0 : index
    %c3 = arith.constant 3 : index
    %c0_48 = arith.constant 0 : index
    %c0_49 = arith.constant 0 : index
    %57 = vector.load %arg2[%c0_47, %c3, %c0_48, %c0_49] : memref<1x4x8x8xf32, #tpu.memory_space<vmem>>, vector<1x1x8x8xf32>
    %58 = vector.shape_cast %57 : vector<1x1x8x8xf32> to vector<8x8xf32>
    %cst_50 = arith.constant 0.353553385 : f32
    %59 = vector.broadcast %cst_50 : f32 to vector<8x8xf32>
    %60 = arith.mulf %58, %59 : vector<8x8xf32>
    %c0_51 = arith.constant 0 : index
    %c3_52 = arith.constant 3 : index
    %c0_53 = arith.constant 0 : index
    %c0_54 = arith.constant 0 : index
    %61 = vector.load %arg3[%c0_51, %c3_52, %c0_53, %c0_54] : memref<1x4x8x8xf32, #tpu.memory_space<vmem>>, vector<1x1x8x8xf32>
    %62 = vector.shape_cast %61 : vector<1x1x8x8xf32> to vector<8x8xf32>
    %c0_55 = arith.constant 0 : index
    %c3_56 = arith.constant 3 : index
    %c0_57 = arith.constant 0 : index
    %c0_58 = arith.constant 0 : index
    %63 = vector.load %arg4[%c0_55, %c3_56, %c0_57, %c0_58] : memref<1x4x8x8xf32, #tpu.memory_space<vmem>>, vector<1x1x8x8xf32>
    %64 = vector.shape_cast %63 : vector<1x1x8x8xf32> to vector<8x8xf32>
    %cst_59 = arith.constant dense<0.000000e+00> : vector<8x8xf32>
    %65 = tpu.matmul %60, %62, %cst_59 {dimension_numbers = #tpu.dot_dimension_numbers<[1], [1], [0], [0], [0, 0, 1, 0], [], []>} : vector<8x8xf32>, vector<8x8xf32>, vector<8x8xf32> -> vector<8x8xf32>
    %cst_60 = arith.constant dense<0xFF800000> : vector<8xf32>
    %66 = vector.multi_reduction <maximumf>, %65, %cst_60 [1] : vector<8x8xf32> to vector<8xf32>
    %67 = vector.shape_cast %66 : vector<8xf32> to vector<8x1xf32>
    %68 = vector.broadcast %67 : vector<8x1xf32> to vector<8x8xf32>
    %69 = arith.subf %65, %68 : vector<8x8xf32>
    %70 = math.exp %69 : vector<8x8xf32>
    %cst_61 = arith.constant dense<0.000000e+00> : vector<8xf32>
    %71 = vector.multi_reduction <add>, %70, %cst_61 [1] : vector<8x8xf32> to vector<8xf32>
    %72 = vector.shape_cast %71 : vector<8xf32> to vector<8x1xf32>
    %cst_62 = arith.constant dense<0.000000e+00> : vector<8x8xf32>
    %73 = tpu.matmul %70, %64, %cst_62 {dimension_numbers = #tpu.dot_dimension_numbers<[1], [0], [0], [1], [0, 0, 1, 1], [], []>} : vector<8x8xf32>, vector<8x8xf32>, vector<8x8xf32> -> vector<8x8xf32>
    %74 = vector.broadcast %72 : vector<8x1xf32> to vector<8x8xf32>
    %75 = arith.divf %73, %74 : vector<8x8xf32>
    %76 = tpu.concatenate %18, %37, %56, %75 in 1 : vector<8x8xf32>, vector<8x8xf32>, vector<8x8xf32>, vector<8x8xf32> -> vector<8x32xf32>
    %c0_63 = arith.constant 0 : index
    %c0_64 = arith.constant 0 : index
    %77 = vector.load %arg5[%c0_63, %c0_64] : memref<32x32xf32, #tpu.memory_space<vmem>>, vector<32x32xf32>
    %cst_65 = arith.constant dense<0.000000e+00> : vector<8x32xf32>
    %78 = tpu.matmul %76, %77, %cst_65 {dimension_numbers = #tpu.dot_dimension_numbers<[1], [0], [0], [1], [0, 0, 1, 1], [], []>} : vector<8x32xf32>, vector<32x32xf32>, vector<8x32xf32> -> vector<8x32xf32>
    %c0_66 = arith.constant 0 : index
    %c0_67 = arith.constant 0 : index
    %79 = vector.load %arg6[%c0_66, %c0_67] : memref<1x32xf32, #tpu.memory_space<vmem>>, vector<1x32xf32>
    %80 = vector.broadcast %79 : vector<1x32xf32> to vector<8x32xf32>
    %81 = arith.addf %78, %80 : vector<8x32xf32>
    %c0_68 = arith.constant 0 : index
    %c0_69 = arith.constant 0 : index
    %c0_70 = arith.constant 0 : index
    %82 = vector.load %arg7[%c0_68, %c0_69, %c0_70] : memref<1x8x32xf32, #tpu.memory_space<vmem>>, vector<1x8x32xf32>
    %83 = vector.shape_cast %82 : vector<1x8x32xf32> to vector<8x32xf32>
    %84 = vector.shape_cast %81 : vector<8x32xf32> to vector<1x8x32xf32>
    tpu.vector_store %arg7[%c0_68, %c0_69, %c0_70], %84 {strides = array<i32>} : memref<1x8x32xf32, #tpu.memory_space<vmem>>, vector<1x8x32xf32>,
    return
  }
  func.func @transform_0(%arg0: i32, %arg1: i32) -> (i32, i32, i32, i32) {
    %c0_i32 = arith.constant 0 : i32
    %c0_i32_0 = arith.constant 0 : i32
    %c0_i32_1 = arith.constant 0 : i32
    return %arg0, %c0_i32, %arg1, %c0_i32_0 : i32, i32, i32, i32
  }
  func.func @transform_1(%arg0: i32, %arg1: i32) -> (i32, i32, i32, i32) {
    %c0_i32 = arith.constant 0 : i32
    %c0_i32_0 = arith.constant 0 : i32
    %c0_i32_1 = arith.constant 0 : i32
    %c0_i32_2 = arith.constant 0 : i32
    return %arg0, %c0_i32, %c0_i32_0, %c0_i32_1 : i32, i32, i32, i32
  }
  func.func @transform_2(%arg0: i32, %arg1: i32) -> (i32, i32, i32, i32) {
    %c0_i32 = arith.constant 0 : i32
    %c0_i32_0 = arith.constant 0 : i32
    %c0_i32_1 = arith.constant 0 : i32
    %c0_i32_2 = arith.constant 0 : i32
    return %arg0, %c0_i32, %c0_i32_0, %c0_i32_1 : i32, i32, i32, i32
  }
  func.func @transform_3(%arg0: i32, %arg1: i32) -> (i32, i32) {
    %c0_i32 = arith.constant 0 : i32
    %c0_i32_0 = arith.constant 0 : i32
    %c0_i32_1 = arith.constant 0 : i32
    return %c0_i32, %c0_i32_0 : i32, i32
  }
  func.func @transform_4(%arg0: i32, %arg1: i32) -> (i32, i32) {
    %c0_i32 = arith.constant 0 : i32
    %c0_i32_0 = arith.constant 0 : i32
    %c0_i32_1 = arith.constant 0 : i32
    return %c0_i32, %c0_i32_0 : i32, i32
  }
  func.func @transform_5(%arg0: i32, %arg1: i32) -> (i32, i32, i32) {
    %c0_i32 = arith.constant 0 : i32
    %c0_i32_0 = arith.constant 0 : i32
    return %arg0, %arg1, %c0_i32 : i32, i32, i32
  }
}

</mosaic_0001>

<llo_original>
// kernel: tpu_custom_call.1
$region0: #{tpu_custom_call.1}
  #allocation0 [shape = 'u32[]', space=smem, size = 0x4, offset = 0x4, fixed_abs, tag = 'smem constant byte address 0x4 - core index']
  #allocation1 [shape = 'u32[144,128]{1,0:T(1,128)}', space=vmem, size = 0x12000, scoped, tag = 'internal scratch']
  %s0 = inlined_call_operand.hbm [shape: f32[2,4,8,8], index: 0, kind: input, shape index: {}]
  %s1 = inlined_call_operand.hbm [shape: f32[2,4,8,8], index: 1, kind: input, shape index: {}]
  %s2 = inlined_call_operand.hbm [shape: f32[2,4,8,8], index: 2, kind: input, shape index: {}]
  %s3 = inlined_call_operand.hbm [shape: f32[32,32], index: 3, kind: input, shape index: {}]
  %s4 = inlined_call_operand.vmem [shape: f32[1,32], index: 4, kind: input, shape index: {}]
  %s5 = inlined_call_operand.hbm [shape: f32[2,8,32], index: 5, kind: output, shape index: {}]
  %s6 = sld [smem:[#allocation0]]
  $region69: #{tpu_custom_call.1} parent=0
    _
  %s8 = ssub.s32 1, %s6
  %s9 = scalar_select 0, %s8, %s6
  $region1: #{tpu_custom_call.1} parent=0
    #allocation2 [shape = 'u8[32768]{0}', space=vmem, size = 0x8000, scoped, tag = 'input window, operand 0']
    #allocation3 [shape = 's32[2]{0}', space=sflag, size = 0x8, scoped, tag = 'scoped memory for tpu_custom_call.1']
    #allocation4 [shape = 's32[2]{0}', space=sflag, size = 0x8, scoped, tag = 'scoped memory for tpu_custom_call.1']
    #allocation5 [shape = 'u8[32768]{0}', space=vmem, size = 0x8000, scoped, tag = 'input window, operand 1']
    #allocation6 [shape = 's32[2]{0}', space=sflag, size = 0x8, scoped, tag = 'scoped memory for tpu_custom_call.1']
    #allocation7 [shape = 'u8[32768]{0}', space=vmem, size = 0x8000, scoped, tag = 'input window, operand 2']
    #allocation8 [shape = 'u8[16384]{0}', space=vmem, size = 0x4000, scoped, tag = 'input window, operand 3, single buffered']
    #allocation9 [shape = 's32[1]{0}', space=sflag, size = 0x4, scoped, tag = 'scoped memory for tpu_custom_call.1']
    #allocation10 [shape = 'u8[8192]{0}', space=vmem, size = 0x2000, scoped, tag = 'output window, operand 0']
    %10 = vsyncpa [#allocation3], 0
    %s11 = scalar_lea.sflag [#allocation3], 1
    %12 = vsyncpa %s11, 0
    %13 = vsyncpa [#allocation6], 0
    %s14 = scalar_lea.sflag [#allocation6], 1
    %15 = vsyncpa %s14, 0
    %16 = vsyncpa [#allocation9], 0
    %17 = vsyncpa [#allocation4], 0
    %s18 = scalar_lea.sflag [#allocation4], 1
    %19 = vsyncpa %s18, 0
    loop: start=0, step=1, limit=4
    $region2: #{tpu_custom_call.1} parent=1 // loop_pre_header
      _
    $region3: #{tpu_custom_call.1} parent=1 // loop_header
      %s21 = sphi 0, %s25
      %p22 = scmp.ge.s32.totalorder %s21, 4
      %s28 = sphi 0, %s40
      %s29 = sphi 0, %s36
      %s30 = sphi 0, %s28
      %s31 = sphi 0, %s29
      %s32 = sphi 0, %s30
      %s33 = sphi 0, %s31
      %s45 = sphi 0, %s47
      %s48 = sphi 0, %s45
      %s49 = sphi 0, %s48
      %s65 = sphi 0, %s49
      %s71 = sphi 0, %s73
      %s74 = sphi 0, %s71
      %s75 = sphi 0, %s74
      %s91 = sphi 0, %s75
      %s97 = sphi 0, %s99
      %s100 = sphi 0, %s97
      %s101 = sphi 0, %s100
      %s117 = sphi 0, %s101
      %s121 = sphi 0, %s121
      %s123 = sphi 0, %s121
      %s124 = sphi 0, %s123
      %s138 = sphi 0, %s124
      %s142 = sphi 0, %s142
      %s144 = sphi 0, %s142
      %s145 = sphi 0, %s144
      %s159 = sphi 0, %s145
      %s167 = sphi 0, %s169
      %s170 = sphi 0, %s167
      %s171 = sphi 0, %s170
      %s187 = sphi 0, %s171
    $region4: #{tpu_custom_call.1} parent=1 // loop_header_branch
      %24 = sbr.rel (%p22) target = $region8
    $region5: #{tpu_custom_call.1} parent=1 // loop_body
      %s26 = ssub.s32 %s21, 1
      %s27 = ssub.s32 %s21, 2
      %s34 = sadd.s32 1, %s29
      %p35 = scmp.ge.s32.totalorder %s34, 1
      %s36 = scalar_select %p35, 0, %s34
      %s37 = sadd.s32 1, %s28
      %s38 = scalar_select %p35, %s37, %s28
      %p39 = scmp.ge.s32.totalorder %s38, 2
      %s40 = scalar_select %p39, 0, %s38
      %s41 = ssub.s32 %s28, %s40
      %s42 = ssub.s32 %s29, %s36
      %s43 = sor.u32 %s41, %s42
      %p44 = scmp.eq.s32.totalorder %s43, 0
      %s46 = sadd.s32 %s45, 1
      %s47 = scalar_select %p44, %s45, %s46
      %p50 = pneg %p44
      %p51 = scmp.eq.s32.totalorder %s21, 1
      %p52 = por %p50, %p51
      %p53 = scmp.ne.s32.totalorder %s45, %s48
      %p54 = scmp.eq.s32.totalorder %s21, 0
      %p55 = por %p53, %p54
      %p56 = scmp.ne.s32.totalorder %s45, %s48
      %p57 = scmp.eq.s32.totalorder %s26, 1
      %p58 = por %p56, %p57
      %p59 = scmp.ne.s32.totalorder %s48, %s49
      %p60 = scmp.eq.s32.totalorder %s26, 0
      %p61 = por %p59, %p60
      %p62 = scmp.ne.s32.totalorder %s48, %s49
      %p63 = scmp.eq.s32.totalorder %s27, 1
      %p64 = por %p62, %p63
      %p66 = scmp.ne.s32.totalorder %s49, %s65
      %p67 = scmp.eq.s32.totalorder %s27, 0
      %p68 = por %p66, %p67
      %s69 = ssub.s32 %s28, %s40
      %p70 = scmp.eq.s32.totalorder %s69, 0
      %s72 = sadd.s32 %s71, 1
      %s73 = scalar_select %p70, %s71, %s72
      %p76 = pneg %p70
      %p77 = scmp.eq.s32.totalorder %s21, 1
      %p78 = por %p76, %p77
      %p79 = scmp.ne.s32.totalorder %s71, %s74
      %p80 = scmp.eq.s32.totalorder %s21, 0
      %p81 = por %p79, %p80
      %p82 = scmp.ne.s32.totalorder %s71, %s74
      %p83 = scmp.eq.s32.totalorder %s26, 1
      %p84 = por %p82, %p83
      %p85 = scmp.ne.s32.totalorder %s74, %s75
      %p86 = scmp.eq.s32.totalorder %s26, 0
      %p87 = por %p85, %p86
      %p88 = scmp.ne.s32.totalorder %s74, %s75
      %p89 = scmp.eq.s32.totalorder %s27, 1
      %p90 = por %p88, %p89
      %p92 = scmp.ne.s32.totalorder %s75, %s91
      %p93 = scmp.eq.s32.totalorder %s27, 0
      %p94 = por %p92, %p93
      %s95 = ssub.s32 %s28, %s40
      %p96 = scmp.eq.s32.totalorder %s95, 0
      %s98 = sadd.s32 %s97, 1
      %s99 = scalar_select %p96, %s97, %s98
      %p102 = pneg %p96
      %p103 = scmp.eq.s32.totalorder %s21, 1
      %p104 = por %p102, %p103
      %p105 = scmp.ne.s32.totalorder %s97, %s100
      %p106 = scmp.eq.s32.totalorder %s21, 0
      %p107 = por %p105, %p106
      %p108 = scmp.ne.s32.totalorder %s97, %s100
      %p109 = scmp.eq.s32.totalorder %s26, 1
      %p110 = por %p108, %p109
      %p111 = scmp.ne.s32.totalorder %s100, %s101
      %p112 = scmp.eq.s32.totalorder %s26, 0
      %p113 = por %p111, %p112
      %p114 = scmp.ne.s32.totalorder %s100, %s101
      %p115 = scmp.eq.s32.totalorder %s27, 1
      %p116 = por %p114, %p115
      %p118 = scmp.ne.s32.totalorder %s101, %s117
      %p119 = scmp.eq.s32.totalorder %s27, 0
      %p120 = por %p118, %p119
      %s122 = sadd.s32 %s121, 1
      %p125 = scmp.eq.s32.totalorder %s21, 1
      %p126 = scmp.ne.s32.totalorder %s121, %s123
      %p127 = scmp.eq.s32.totalorder %s21, 0
      %p128 = por %p126, %p127
      %p129 = scmp.ne.s32.totalorder %s121, %s123
      %p130 = scmp.eq.s32.totalorder %s26, 1
      %p131 = por %p129, %p130
      %p132 = scmp.ne.s32.totalorder %s123, %s124
      %p133 = scmp.eq.s32.totalorder %s26, 0
      %p134 = por %p132, %p133
      %p135 = scmp.ne.s32.totalorder %s123, %s124
      %p136 = scmp.eq.s32.totalorder %s27, 1
      %p137 = por %p135, %p136
      %p139 = scmp.ne.s32.totalorder %s124, %s138
      %p140 = scmp.eq.s32.totalorder %s27, 0
      %p141 = por %p139, %p140
      %s143 = sadd.s32 %s142, 1
      %p146 = scmp.eq.s32.totalorder %s21, 1
      %p147 = scmp.ne.s32.totalorder %s142, %s144
      %p148 = scmp.eq.s32.totalorder %s21, 0
      %p149 = por %p147, %p148
      %p150 = scmp.ne.s32.totalorder %s142, %s144
      %p151 = scmp.eq.s32.totalorder %s26, 1
      %p152 = por %p150, %p151
      %p153 = scmp.ne.s32.totalorder %s144, %s145
      %p154 = scmp.eq.s32.totalorder %s26, 0
      %p155 = por %p153, %p154
      %p156 = scmp.ne.s32.totalorder %s144, %s145
      %p157 = scmp.eq.s32.totalorder %s27, 1
      %p158 = por %p156, %p157
      %p160 = scmp.ne.s32.totalorder %s145, %s159
      %p161 = scmp.eq.s32.totalorder %s27, 0
      %p162 = por %p160, %p161
      %s163 = ssub.s32 %s28, %s40
      %s164 = ssub.s32 %s29, %s36
      %s165 = sor.u32 %s163, %s164
      %p166 = scmp.eq.s32.totalorder %s165, 0
      %s168 = sadd.s32 %s167, 1
      %s169 = scalar_select %p166, %s167, %s168
      %p172 = pneg %p166
      %p173 = scmp.eq.s32.totalorder %s21, 1
      %p174 = por %p172, %p173
      %p175 = scmp.ne.s32.totalorder %s167, %s170
      %p176 = scmp.eq.s32.totalorder %s21, 0
      %p177 = por %p175, %p176
      %p178 = scmp.ne.s32.totalorder %s167, %s170
      %p179 = scmp.eq.s32.totalorder %s26, 1
      %p180 = por %p178, %p179
      %p181 = scmp.ne.s32.totalorder %s170, %s171
      %p182 = scmp.eq.s32.totalorder %s26, 0
      %p183 = por %p181, %p182
      %p184 = scmp.ne.s32.totalorder %s170, %s171
      %p185 = scmp.eq.s32.totalorder %s27, 1
      %p186 = por %p184, %p185
      %p188 = scmp.ne.s32.totalorder %s171, %s187
      %p189 = scmp.eq.s32.totalorder %s27, 0
      %p190 = por %p188, %p189
      %p191 = scmp.le.s32.totalorder 1, %s21
      %p192 = scmp.lt.s32.totalorder %s21, 3
      %p193 = pnand %p191, %p192
      %p194 = pneg %p193
      // Predicated region
      $region9: #{tpu_custom_call.1} parent=5 // pred_check
        _
      $region10: #{tpu_custom_call.1} parent=5 // pred_check_branch
        %196 = sbr.rel (%p193) target = $region12
      $region11: #{tpu_custom_call.1} parent=5 // pred_region
        %s197 = ssub.s32 %s21, 1
        // Predicated region
        $region13: #{tpu_custom_call.1} parent=11 // pred_check
          %p198 = pneg %p134
        $region14: #{tpu_custom_call.1} parent=11 // pred_check_branch
          %200 = sbr.rel (%p198) target = $region16
        $region15: #{tpu_custom_call.1} parent=11 // pred_region
          %s202 = ssub.s32 512, 512
          %203 = vsyncadd [#allocation9], %s202
          %s204 = sshll.u32 [#allocation8], 4
          %s205 = int_to_ptr.vmem [resolvable:$true] %s204
          %210 = dma.hbm_to_vmem [thread:$0]  %s3, 512, %s205, [#allocation9], 128, 128, 8
        $region16: #{tpu_custom_call.1} parent=11 // pred_fallthru
          _
        // Predicated region
        $region17: #{tpu_custom_call.1} parent=11 // pred_check
          %p211 = pneg %p155
        $region18: #{tpu_custom_call.1} parent=11 // pred_check_branch
          %213 = sbr.rel (%p211) target = $region20
        $region19: #{tpu_custom_call.1} parent=11 // pred_region
          _
        $region20: #{tpu_custom_call.1} parent=11 // pred_fallthru
          _
      $region12: #{tpu_custom_call.1} parent=5 // pred_fallthru
        _
      %p214 = scmp.lt.s32.totalorder %s21, 2
      // Predicated region
      $region21: #{tpu_custom_call.1} parent=5 // pred_check
        %p215 = pneg %p214
      $region22: #{tpu_custom_call.1} parent=5 // pred_check_branch
        %217 = sbr.rel (%p215) target = $region24
      $region23: #{tpu_custom_call.1} parent=5 // pred_region
        // Predicated region
        $region25: #{tpu_custom_call.1} parent=23 // pred_check
          %p218 = pneg %p55
        $region26: #{tpu_custom_call.1} parent=23 // pred_check_branch
          %220 = sbr.rel (%p218) target = $region28
        $region27: #{tpu_custom_call.1} parent=23 // pred_region
          %s221 = sand.u32 %s45, 1
          %s222 = scalar_lea.sflag [#allocation3], %s221
          %s223 = sand.u32 %s45, 1
          %s224 = smul.addr %s223, 32
          %s225 = scalar_lea.vmem [#allocation2], %s224
          %s227 = ssub.s32 512, 512
          %228 = vsyncadd %s222, %s227
          %s229 = smul.addr %s28, 4
          %s230 = sadd.s32 %s29, %s229
          %s231 = smul.addr %s230, 128
          %s232 = scalar_lea.hbm %s0, %s231
          %s233 = sshll.u32 %s225, 4
          %s234 = int_to_ptr.vmem [resolvable:$true] %s233
          %239 = dma.hbm_to_vmem [thread:$0]  %s232, 512, %s234, %s222, 128, 128, 8
        $region28: #{tpu_custom_call.1} parent=23 // pred_fallthru
          _
        // Predicated region
        $region29: #{tpu_custom_call.1} parent=23 // pred_check
          %p240 = pneg %p81
        $region30: #{tpu_custom_call.1} parent=23 // pred_check_branch
          %242 = sbr.rel (%p240) target = $region32
        $region31: #{tpu_custom_call.1} parent=23 // pred_region
          %s243 = sand.u32 %s21, 1
          %s244 = scalar_lea.sflag [#allocation6], %s243
          %s245 = sand.u32 %s71, 1
          %s246 = smul.addr %s245, 32
          %s247 = scalar_lea.vmem [#allocation5], %s246
          %s249 = ssub.s32 512, 512
          %250 = vsyncadd %s244, %s249
          %s251 = smul.addr %s28, 4
          %s252 = smul.addr %s251, 128
          %s253 = scalar_lea.hbm %s1, %s252
          %s254 = sshll.u32 %s247, 4
          %s255 = int_to_ptr.vmem [resolvable:$true] %s254
          %260 = dma.hbm_to_vmem [thread:$0]  %s253, 512, %s255, %s244, 128, 128, 8
        $region32: #{tpu_custom_call.1} parent=23 // pred_fallthru
          _
        // Predicated region
        $region33: #{tpu_custom_call.1} parent=23 // pred_check
          %p261 = pneg %p107
        $region34: #{tpu_custom_call.1} parent=23 // pred_check_branch
          %263 = sbr.rel (%p261) target = $region36
        $region35: #{tpu_custom_call.1} parent=23 // pred_region
          %s264 = sand.u32 %s21, 1
          %s265 = scalar_lea.sflag [#allocation6], %s264
          %s266 = sand.u32 %s97, 1
          %s267 = smul.addr %s266, 32
          %s268 = scalar_lea.vmem [#allocation7], %s267
          %s270 = ssub.s32 512, 512
          %271 = vsyncadd %s265, %s270
          %s272 = smul.addr %s28, 4
          %s273 = smul.addr %s272, 128
          %s274 = scalar_lea.hbm %s2, %s273
          %s275 = sshll.u32 %s268, 4
          %s276 = int_to_ptr.vmem [resolvable:$true] %s275
          %281 = dma.hbm_to_vmem [thread:$0]  %s274, 512, %s276, %s265, 128, 128, 8
        $region36: #{tpu_custom_call.1} parent=23 // pred_fallthru
          _
      $region24: #{tpu_custom_call.1} parent=5 // pred_fallthru
        _
      %p282 = scmp.le.s32.totalorder 1, %s21
      %p283 = scmp.lt.s32.totalorder %s21, 3
      %p284 = pnand %p282, %p283
      %p285 = pneg %p284
      // Predicated region
      $region37: #{tpu_custom_call.1} parent=5 // pred_check
        _
      $region38: #{tpu_custom_call.1} parent=5 // pred_check_branch
        %287 = sbr.rel (%p284) target = $region40
      $region39: #{tpu_custom_call.1} parent=5 // pred_region
        %s288 = ssub.s32 %s21, 1
        %s289 = sand.u32 %s48, 1
        %s290 = scalar_lea.sflag [#allocation3], %s289
        %s291 = sand.u32 %s48, 1
        %s292 = smul.addr %s291, 32
        %s293 = scalar_lea.vmem [#allocation2], %s292
        // Predicated region
        $region41: #{tpu_custom_call.1} parent=39 // pred_check
          %p294 = pneg %p61
        $region42: #{tpu_custom_call.1} parent=39 // pred_check_branch
          %296 = sbr.rel (%p294) target = $region44
        $region43: #{tpu_custom_call.1} parent=39 // pred_region
          %297 = dma.done %s290, 512
        $region44: #{tpu_custom_call.1} parent=39 // pred_fallthru
          _
        %s298 = sand.u32 %s26, 1
        %s299 = scalar_lea.sflag [#allocation6], %s298
        %s300 = sand.u32 %s74, 1
        %s301 = smul.addr %s300, 32
        %s302 = scalar_lea.vmem [#allocation5], %s301
        // Predicated region
        $region45: #{tpu_custom_call.1} parent=39 // pred_check
          %p303 = pneg %p87
        $region46: #{tpu_custom_call.1} parent=39 // pred_check_branch
          %305 = sbr.rel (%p303) target = $region48
        $region47: #{tpu_custom_call.1} parent=39 // pred_region
          %306 = dma.done %s299, 512
        $region48: #{tpu_custom_call.1} parent=39 // pred_fallthru
          _
        %s307 = sand.u32 %s26, 1
        %s308 = scalar_lea.sflag [#allocation6], %s307
        %s309 = sand.u32 %s100, 1
        %s310 = smul.addr %s309, 32
        %s311 = scalar_lea.vmem [#allocation7], %s310
        // Predicated region
        $region49: #{tpu_custom_call.1} parent=39 // pred_check
          %p312 = pneg %p113
        $region50: #{tpu_custom_call.1} parent=39 // pred_check_branch
          %314 = sbr.rel (%p312) target = $region52
        $region51: #{tpu_custom_call.1} parent=39 // pred_region
          %315 = dma.done %s308, 512
        $region52: #{tpu_custom_call.1} parent=39 // pred_fallthru
          _
        // Predicated region
        $region53: #{tpu_custom_call.1} parent=39 // pred_check
          %p316 = pneg %p134
        $region54: #{tpu_custom_call.1} parent=39 // pred_check_branch
          %318 = sbr.rel (%p316) target = $region56
        $region55: #{tpu_custom_call.1} parent=39 // pred_region
          %319 = dma.done [#allocation9], 512
        $region56: #{tpu_custom_call.1} parent=39 // pred_fallthru
          _
        %s320 = sand.u32 %s48, 1
        %s321 = scalar_lea.sflag [#allocation3], %s320
        %s322 = sand.u32 %s48, 1
        %s323 = smul.addr %s322, 32
        %s324 = scalar_lea.vmem [#allocation2], %s323
        %p325 = pneg %p61
        %p326 = pneg %p58
        %s327 = sand.u32 %s26, 1
        %s328 = scalar_lea.sflag [#allocation6], %s327
        %s329 = sand.u32 %s74, 1
        %s330 = smul.addr %s329, 32
        %s331 = scalar_lea.vmem [#allocation5], %s330
        %p332 = pneg %p87
        %p333 = pneg %p84
        %s334 = sand.u32 %s26, 1
        %s335 = scalar_lea.sflag [#allocation6], %s334
        %s336 = sand.u32 %s100, 1
        %s337 = smul.addr %s336, 32
        %s338 = scalar_lea.vmem [#allocation7], %s337
        %p339 = pneg %p113
        %p340 = pneg %p110
        %p341 = pneg %p134
        %p342 = pneg %p131
        %p343 = pneg %p155
        %p344 = pneg %p152
        %p345 = pneg %p183
        %p346 = pneg %p180
        %s347 = sand.u32 %s170, 1
        %s348 = scalar_lea.sflag [#allocation4], %s347
        %s349 = sand.u32 %s170, 1
        %s350 = smul.addr %s349, 8
        %s351 = scalar_lea.vmem [#allocation10], %s350
        %v352 = vld [vmem:[%s293] sm:$0xff]
        %v353 = vmul.f32 %v352, 0.35355338
        %v354 = vld [vmem:[%s302] sm:$0xff]
        %v355 = vld [vmem:[%s311] sm:$0xff]
        %vm356 = vcmask 64512
        %v358 = vsel %vm356, %v353, 0
        %v361 = vsel %vm356, %v354, 0
        %363 = vmatprep.subr.mxu0 0.0
        %364 = vmatpush1.xpose.msra.mxu0 %v361
        %365 = vmatprep.subr.mxu0 0.0
        %366 = vmatpush1.xpose.msra.mxu0 0.0
        %367 = vmatprep.subr.mxu0 0.0
        %368 = vmatpush1.xpose.msra.mxu0 0.0
        %369 = vmatprep.subr.mxu0 0.0
        %370 = vmatpush1.xpose.msra.mxu0 0.0
        %371 = vmatprep.subr.mxu0 0.0
        %372 = vmatpush1.xpose.msra.mxu0 0.0
        %373 = vmatprep.subr.mxu0 0.0
        %374 = vmatpush1.xpose.msra.mxu0 0.0
        %375 = vmatprep.subr.mxu0 0.0
        %376 = vmatpush1.xpose.msra.mxu0 0.0
        %377 = vmatprep.subr.mxu0 0.0
        %378 = vmatpush1.xpose.msra.mxu0 0.0
        %379 = vmatprep.subr.mxu0 0.0
        %380 = vmatpush1.xpose.msra.mxu0 0.0
        %381 = vmatprep.subr.mxu0 0.0
        %382 = vmatpush1.xpose.msra.mxu0 0.0
        %383 = vmatprep.subr.mxu0 0.0
        %384 = vmatpush1.xpose.msra.mxu0 0.0
        %385 = vmatprep.subr.mxu0 0.0
        %386 = vmatpush1.xpose.msra.mxu0 0.0
        %387 = vmatprep.subr.mxu0 0.0
        %388 = vmatpush1.xpose.msra.mxu0 0.0
        %389 = vmatprep.subr.mxu0 0.0
        %390 = vmatpush1.xpose.msra.mxu0 0.0
        %391 = vmatprep.subr.mxu0 0.0
        %392 = vmatpush1.xpose.msra.mxu0 0.0
        %393 = vmatprep.subr.mxu0 0.0
        %394 = vmatpush1.xpose.msra.mxu0 0.0
        %395 = vmatprep.subr.mxu0 0.0
        %396 = vmatpush1.xpose.msra.mxu0 0.0
        %397 = vmatprep.subr.mxu0 0.0
        %398 = vmatpush1.xpose.msra.mxu0 0.0
        %399 = vmatprep.subr.mxu0 0.0
        %400 = vmatpush1.xpose.msra.mxu0 0.0
        %401 = vmatprep.subr.mxu0 0.0
        %402 = vmatpush1.xpose.msra.mxu0 0.0
        %403 = vmatprep.subr.mxu0 0.0
        %404 = vmatpush1.xpose.msra.mxu0 0.0
        %405 = vmatprep.subr.mxu0 0.0
        %406 = vmatpush1.xpose.msra.mxu0 0.0
        %407 = vmatprep.subr.mxu0 0.0
        %408 = vmatpush1.xpose.msra.mxu0 0.0
        %409 = vmatprep.subr.mxu0 0.0
        %410 = vmatpush1.xpose.msra.mxu0 0.0
        %411 = vmatprep.subr.mxu0 0.0
        %412 = vmatpush1.xpose.msra.mxu0 0.0
        %413 = vmatprep.subr.mxu0 0.0
        %414 = vmatpush1.xpose.msra.mxu0 0.0
        %415 = vmatprep.subr.mxu0 0.0
        %416 = vmatpush1.xpose.msra.mxu0 0.0
        %417 = vmatprep.subr.mxu0 0.0
        %418 = vmatpush1.xpose.msra.mxu0 0.0
        %419 = vmatprep.subr.mxu0 0.0
        %420 = vmatpush1.xpose.msra.mxu0 0.0
        %421 = vmatprep.subr.mxu0 0.0
        %422 = vmatpush1.xpose.msra.mxu0 0.0
        %423 = vmatprep.subr.mxu0 0.0
        %424 = vmatpush1.xpose.msra.mxu0 0.0
        %425 = vmatprep.subr.mxu0 0.0
        %426 = vmatpush1.xpose.msra.mxu0 0.0
        %427 = vmatprep.mubr.f32.mxu0 0.0
        %428 = vmatmul.mubr.f32.gmra.mrb[0].mxu0 %v358
        %v429 = vpop.f32.mrb[0].mxu0
        %v430 = vadd.f32 0.0, %v429
        %v431 = vpop.f32.mrb[0].mxu0
        %432 = vdwg.mxu0
        %v433 = vsel %vm356, %v430, -inf
        %434 = vmax.xlane.f32.xlu0 %v433
        %v435 = vpop.xlane.xlu0 %434
        %v436 = vsub.f32 %v430, %v435
        %v437 = vmul.f32 %v436, 1.442695
        %v438 = vpow.pop %v437
        %v439 = vsel %vm356, %v438, 0.0
        %440 = vadd.xlane.f32.xlu0 %v439
        %v441 = vpop.xlane.xlu0 %440
        %v443 = vsel %vm356, %v438, 0
        %445 = vmatprep.subr.mxu0 0.0
        %446 = vmatpush1.msra.mxu0 %v355
        %447 = vmatprep.subr.mxu0 0.0
        %448 = vmatpush1.msra.mxu0 0.0
        %449 = vmatprep.subr.mxu0 0.0
        %450 = vmatpush1.msra.mxu0 0.0
        %451 = vmatprep.subr.mxu0 0.0
        %452 = vmatpush1.msra.mxu0 0.0
        %453 = vmatprep.subr.mxu0 0.0
        %454 = vmatpush1.msra.mxu0 0.0
        %455 = vmatprep.subr.mxu0 0.0
        %456 = vmatpush1.msra.mxu0 0.0
        %457 = vmatprep.subr.mxu0 0.0
        %458 = vmatpush1.msra.mxu0 0.0
        %459 = vmatprep.subr.mxu0 0.0
        %460 = vmatpush1.msra.mxu0 0.0
        %461 = vmatprep.subr.mxu0 0.0
        %462 = vmatpush1.msra.mxu0 0.0
        %463 = vmatprep.subr.mxu0 0.0
        %464 = vmatpush1.msra.mxu0 0.0
        %465 = vmatprep.subr.mxu0 0.0
        %466 = vmatpush1.msra.mxu0 0.0
        %467 = vmatprep.subr.mxu0 0.0
        %468 = vmatpush1.msra.mxu0 0.0
        %469 = vmatprep.subr.mxu0 0.0
        %470 = vmatpush1.msra.mxu0 0.0
        %471 = vmatprep.subr.mxu0 0.0
        %472 = vmatpush1.msra.mxu0 0.0
        %473 = vmatprep.subr.mxu0 0.0
        %474 = vmatpush1.msra.mxu0 0.0
        %475 = vmatprep.subr.mxu0 0.0
        %476 = vmatpush1.msra.mxu0 0.0
        %477 = vmatprep.subr.mxu0 0.0
        %478 = vmatpush1.msra.mxu0 0.0
        %479 = vmatprep.subr.mxu0 0.0
        %480 = vmatpush1.msra.mxu0 0.0
        %481 = vmatprep.subr.mxu0 0.0
        %482 = vmatpush1.msra.mxu0 0.0
        %483 = vmatprep.subr.mxu0 0.0
        %484 = vmatpush1.msra.mxu0 0.0
        %485 = vmatprep.subr.mxu0 0.0
        %486 = vmatpush1.msra.mxu0 0.0
        %487 = vmatprep.subr.mxu0 0.0
        %488 = vmatpush1.msra.mxu0 0.0
        %489 = vmatprep.subr.mxu0 0.0
        %490 = vmatpush1.msra.mxu0 0.0
        %491 = vmatprep.subr.mxu0 0.0
        %492 = vmatpush1.msra.mxu0 0.0
        %493 = vmatprep.subr.mxu0 0.0
        %494 = vmatpush1.msra.mxu0 0.0
        %495 = vmatprep.subr.mxu0 0.0
        %496 = vmatpush1.msra.mxu0 0.0
        %497 = vmatprep.subr.mxu0 0.0
        %498 = vmatpush1.msra.mxu0 0.0
        %499 = vmatprep.subr.mxu0 0.0
        %500 = vmatpush1.msra.mxu0 0.0
        %501 = vmatprep.subr.mxu0 0.0
        %502 = vmatpush1.msra.mxu0 0.0
        %503 = vmatprep.subr.mxu0 0.0
        %504 = vmatpush1.msra.mxu0 0.0
        %505 = vmatprep.subr.mxu0 0.0
        %506 = vmatpush1.msra.mxu0 0.0
        %507 = vmatprep.subr.mxu0 0.0
        %508 = vmatpush1.msra.mxu0 0.0
        %509 = vmatprep.mubr.f32.mxu0 0.0
        %510 = vmatmul.mubr.f32.gmra.mrb[0].mxu0 %v443
        %v511 = vpop.f32.mrb[0].mxu0
        %v512 = vadd.f32 0.0, %v511
        %v513 = vpop.f32.mrb[0].mxu0
        %514 = vdwg.mxu0
        %v515 = vrcp.pop %v441
        %v516 = vmul.f32 %v512, %v515
        %s517 = scalar_lea.vmem %s293, 8 [#allocation2]
        %v518 = vld [vmem:[%s517] sm:$0xff]
        %v519 = vmul.f32 %v518, 0.35355338
        %s520 = scalar_lea.vmem %s302, 8 [#allocation5]
        %v521 = vld [vmem:[%s520] sm:$0xff]
        %s522 = scalar_lea.vmem %s311, 8 [#allocation7]
        %v523 = vld [vmem:[%s522] sm:$0xff]
        %v525 = vsel %vm356, %v519, 0
        %v528 = vsel %vm356, %v521, 0
        %530 = vmatprep.subr.mxu0 0.0
        %531 = vmatpush1.xpose.msra.mxu0 %v528
        %532 = vmatprep.subr.mxu0 0.0
        %533 = vmatpush1.xpose.msra.mxu0 0.0
        %534 = vmatprep.subr.mxu0 0.0
        %535 = vmatpush1.xpose.msra.mxu0 0.0
        %536 = vmatprep.subr.mxu0 0.0
        %537 = vmatpush1.xpose.msra.mxu0 0.0
        %538 = vmatprep.subr.mxu0 0.0
        %539 = vmatpush1.xpose.msra.mxu0 0.0
        %540 = vmatprep.subr.mxu0 0.0
        %541 = vmatpush1.xpose.msra.mxu0 0.0
        %542 = vmatprep.subr.mxu0 0.0
        %543 = vmatpush1.xpose.msra.mxu0 0.0
        %544 = vmatprep.subr.mxu0 0.0
        %545 = vmatpush1.xpose.msra.mxu0 0.0
        %546 = vmatprep.subr.mxu0 0.0
        %547 = vmatpush1.xpose.msra.mxu0 0.0
        %548 = vmatprep.subr.mxu0 0.0
        %549 = vmatpush1.xpose.msra.mxu0 0.0
        %550 = vmatprep.subr.mxu0 0.0
        %551 = vmatpush1.xpose.msra.mxu0 0.0
        %552 = vmatprep.subr.mxu0 0.0
        %553 = vmatpush1.xpose.msra.mxu0 0.0
        %554 = vmatprep.subr.mxu0 0.0
        %555 = vmatpush1.xpose.msra.mxu0 0.0
        %556 = vmatprep.subr.mxu0 0.0
        %557 = vmatpush1.xpose.msra.mxu0 0.0
        %558 = vmatprep.subr.mxu0 0.0
        %559 = vmatpush1.xpose.msra.mxu0 0.0
        %560 = vmatprep.subr.mxu0 0.0
        %561 = vmatpush1.xpose.msra.mxu0 0.0
        %562 = vmatprep.subr.mxu0 0.0
        %563 = vmatpush1.xpose.msra.mxu0 0.0
        %564 = vmatprep.subr.mxu0 0.0
        %565 = vmatpush1.xpose.msra.mxu0 0.0
        %566 = vmatprep.subr.mxu0 0.0
        %567 = vmatpush1.xpose.msra.mxu0 0.0
        %568 = vmatprep.subr.mxu0 0.0
        %569 = vmatpush1.xpose.msra.mxu0 0.0
        %570 = vmatprep.subr.mxu0 0.0
        %571 = vmatpush1.xpose.msra.mxu0 0.0
        %572 = vmatprep.subr.mxu0 0.0
        %573 = vmatpush1.xpose.msra.mxu0 0.0
        %574 = vmatprep.subr.mxu0 0.0
        %575 = vmatpush1.xpose.msra.mxu0 0.0
        %576 = vmatprep.subr.mxu0 0.0
        %577 = vmatpush1.xpose.msra.mxu0 0.0
        %578 = vmatprep.subr.mxu0 0.0
        %579 = vmatpush1.xpose.msra.mxu0 0.0
        %580 = vmatprep.subr.mxu0 0.0
        %581 = vmatpush1.xpose.msra.mxu0 0.0
        %582 = vmatprep.subr.mxu0 0.0
        %583 = vmatpush1.xpose.msra.mxu0 0.0
        %584 = vmatprep.subr.mxu0 0.0
        %585 = vmatpush1.xpose.msra.mxu0 0.0
        %586 = vmatprep.subr.mxu0 0.0
        %587 = vmatpush1.xpose.msra.mxu0 0.0
        %588 = vmatprep.subr.mxu0 0.0
        %589 = vmatpush1.xpose.msra.mxu0 0.0
        %590 = vmatprep.subr.mxu0 0.0
        %591 = vmatpush1.xpose.msra.mxu0 0.0
        %592 = vmatprep.subr.mxu0 0.0
        %593 = vmatpush1.xpose.msra.mxu0 0.0
        %594 = vmatprep.mubr.f32.mxu0 0.0
        %595 = vmatmul.mubr.f32.gmra.mrb[0].mxu0 %v525
        %v596 = vpop.f32.mrb[0].mxu0
        %v597 = vadd.f32 0.0, %v596
        %v598 = vpop.f32.mrb[0].mxu0
        %599 = vdwg.mxu0
        %v600 = vsel %vm356, %v597, -inf
        %601 = vmax.xlane.f32.xlu0 %v600
        %v602 = vpop.xlane.xlu0 %601
        %v603 = vsub.f32 %v597, %v602
        %v604 = vmul.f32 %v603, 1.442695
        %v605 = vpow.pop %v604
        %v606 = vsel %vm356, %v605, 0.0
        %607 = vadd.xlane.f32.xlu0 %v606
        %v608 = vpop.xlane.xlu0 %607
        %v610 = vsel %vm356, %v605, 0
        %612 = vmatprep.subr.mxu0 0.0
        %613 = vmatpush1.msra.mxu0 %v523
        %614 = vmatprep.subr.mxu0 0.0
        %615 = vmatpush1.msra.mxu0 0.0
        %616 = vmatprep.subr.mxu0 0.0
        %617 = vmatpush1.msra.mxu0 0.0
        %618 = vmatprep.subr.mxu0 0.0
        %619 = vmatpush1.msra.mxu0 0.0
        %620 = vmatprep.subr.mxu0 0.0
        %621 = vmatpush1.msra.mxu0 0.0
        %622 = vmatprep.subr.mxu0 0.0
        %623 = vmatpush1.msra.mxu0 0.0
        %624 = vmatprep.subr.mxu0 0.0
        %625 = vmatpush1.msra.mxu0 0.0
        %626 = vmatprep.subr.mxu0 0.0
        %627 = vmatpush1.msra.mxu0 0.0
        %628 = vmatprep.subr.mxu0 0.0
        %629 = vmatpush1.msra.mxu0 0.0
        %630 = vmatprep.subr.mxu0 0.0
        %631 = vmatpush1.msra.mxu0 0.0
        %632 = vmatprep.subr.mxu0 0.0
        %633 = vmatpush1.msra.mxu0 0.0
        %634 = vmatprep.subr.mxu0 0.0
        %635 = vmatpush1.msra.mxu0 0.0
        %636 = vmatprep.subr.mxu0 0.0
        %637 = vmatpush1.msra.mxu0 0.0
        %638 = vmatprep.subr.mxu0 0.0
        %639 = vmatpush1.msra.mxu0 0.0
        %640 = vmatprep.subr.mxu0 0.0
        %641 = vmatpush1.msra.mxu0 0.0
        %642 = vmatprep.subr.mxu0 0.0
        %643 = vmatpush1.msra.mxu0 0.0
        %644 = vmatprep.subr.mxu0 0.0
        %645 = vmatpush1.msra.mxu0 0.0
        %646 = vmatprep.subr.mxu0 0.0
        %647 = vmatpush1.msra.mxu0 0.0
        %648 = vmatprep.subr.mxu0 0.0
        %649 = vmatpush1.msra.mxu0 0.0
        %650 = vmatprep.subr.mxu0 0.0
        %651 = vmatpush1.msra.mxu0 0.0
        %652 = vmatprep.subr.mxu0 0.0
        %653 = vmatpush1.msra.mxu0 0.0
        %654 = vmatprep.subr.mxu0 0.0
        %655 = vmatpush1.msra.mxu0 0.0
        %656 = vmatprep.subr.mxu0 0.0
        %657 = vmatpush1.msra.mxu0 0.0
        %658 = vmatprep.subr.mxu0 0.0
        %659 = vmatpush1.msra.mxu0 0.0
        %660 = vmatprep.subr.mxu0 0.0
        %661 = vmatpush1.msra.mxu0 0.0
        %662 = vmatprep.subr.mxu0 0.0
        %663 = vmatpush1.msra.mxu0 0.0
        %664 = vmatprep.subr.mxu0 0.0
        %665 = vmatpush1.msra.mxu0 0.0
        %666 = vmatprep.subr.mxu0 0.0
        %667 = vmatpush1.msra.mxu0 0.0
        %668 = vmatprep.subr.mxu0 0.0
        %669 = vmatpush1.msra.mxu0 0.0
        %670 = vmatprep.subr.mxu0 0.0
        %671 = vmatpush1.msra.mxu0 0.0
        %672 = vmatprep.subr.mxu0 0.0
        %673 = vmatpush1.msra.mxu0 0.0
        %674 = vmatprep.subr.mxu0 0.0
        %675 = vmatpush1.msra.mxu0 0.0
        %676 = vmatprep.mubr.f32.mxu0 0.0
        %677 = vmatmul.mubr.f32.gmra.mrb[0].mxu0 %v610
        %v678 = vpop.f32.mrb[0].mxu0
        %v679 = vadd.f32 0.0, %v678
        %v680 = vpop.f32.mrb[0].mxu0
        %681 = vdwg.mxu0
        %v682 = vrcp.pop %v608
        %v683 = vmul.f32 %v679, %v682
        %s684 = scalar_lea.vmem %s293, 16 [#allocation2]
        %v685 = vld [vmem:[%s684] sm:$0xff]
        %v686 = vmul.f32 %v685, 0.35355338
        %s687 = scalar_lea.vmem %s302, 16 [#allocation5]
        %v688 = vld [vmem:[%s687] sm:$0xff]
        %s689 = scalar_lea.vmem %s311, 16 [#allocation7]
        %v690 = vld [vmem:[%s689] sm:$0xff]
        %v692 = vsel %vm356, %v686, 0
        %v695 = vsel %vm356, %v688, 0
        %697 = vmatprep.subr.mxu0 0.0
        %698 = vmatpush1.xpose.msra.mxu0 %v695
        %699 = vmatprep.subr.mxu0 0.0
        %700 = vmatpush1.xpose.msra.mxu0 0.0
        %701 = vmatprep.subr.mxu0 0.0
        %702 = vmatpush1.xpose.msra.mxu0 0.0
        %703 = vmatprep.subr.mxu0 0.0
        %704 = vmatpush1.xpose.msra.mxu0 0.0
        %705 = vmatprep.subr.mxu0 0.0
        %706 = vmatpush1.xpose.msra.mxu0 0.0
        %707 = vmatprep.subr.mxu0 0.0
        %708 = vmatpush1.xpose.msra.mxu0 0.0
        %709 = vmatprep.subr.mxu0 0.0
        %710 = vmatpush1.xpose.msra.mxu0 0.0
        %711 = vmatprep.subr.mxu0 0.0
        %712 = vmatpush1.xpose.msra.mxu0 0.0
        %713 = vmatprep.subr.mxu0 0.0
        %714 = vmatpush1.xpose.msra.mxu0 0.0
        %715 = vmatprep.subr.mxu0 0.0
        %716 = vmatpush1.xpose.msra.mxu0 0.0
        %717 = vmatprep.subr.mxu0 0.0
        %718 = vmatpush1.xpose.msra.mxu0 0.0
        %719 = vmatprep.subr.mxu0 0.0
        %720 = vmatpush1.xpose.msra.mxu0 0.0
        %721 = vmatprep.subr.mxu0 0.0
        %722 = vmatpush1.xpose.msra.mxu0 0.0
        %723 = vmatprep.subr.mxu0 0.0
        %724 = vmatpush1.xpose.msra.mxu0 0.0
        %725 = vmatprep.subr.mxu0 0.0
        %726 = vmatpush1.xpose.msra.mxu0 0.0
        %727 = vmatprep.subr.mxu0 0.0
        %728 = vmatpush1.xpose.msra.mxu0 0.0
        %729 = vmatprep.subr.mxu0 0.0
        %730 = vmatpush1.xpose.msra.mxu0 0.0
        %731 = vmatprep.subr.mxu0 0.0
        %732 = vmatpush1.xpose.msra.mxu0 0.0
        %733 = vmatprep.subr.mxu0 0.0
        %734 = vmatpush1.xpose.msra.mxu0 0.0
        %735 = vmatprep.subr.mxu0 0.0
        %736 = vmatpush1.xpose.msra.mxu0 0.0
        %737 = vmatprep.subr.mxu0 0.0
        %738 = vmatpush1.xpose.msra.mxu0 0.0
        %739 = vmatprep.subr.mxu0 0.0
        %740 = vmatpush1.xpose.msra.mxu0 0.0
        %741 = vmatprep.subr.mxu0 0.0
        %742 = vmatpush1.xpose.msra.mxu0 0.0
        %743 = vmatprep.subr.mxu0 0.0
        %744 = vmatpush1.xpose.msra.mxu0 0.0
        %745 = vmatprep.subr.mxu0 0.0
        %746 = vmatpush1.xpose.msra.mxu0 0.0
        %747 = vmatprep.subr.mxu0 0.0
        %748 = vmatpush1.xpose.msra.mxu0 0.0
        %749 = vmatprep.subr.mxu0 0.0
        %750 = vmatpush1.xpose.msra.mxu0 0.0
        %751 = vmatprep.subr.mxu0 0.0
        %752 = vmatpush1.xpose.msra.mxu0 0.0
        %753 = vmatprep.subr.mxu0 0.0
        %754 = vmatpush1.xpose.msra.mxu0 0.0
        %755 = vmatprep.subr.mxu0 0.0
        %756 = vmatpush1.xpose.msra.mxu0 0.0
        %757 = vmatprep.subr.mxu0 0.0
        %758 = vmatpush1.xpose.msra.mxu0 0.0
        %759 = vmatprep.subr.mxu0 0.0
        %760 = vmatpush1.xpose.msra.mxu0 0.0
        %761 = vmatprep.mubr.f32.mxu0 0.0
        %762 = vmatmul.mubr.f32.gmra.mrb[0].mxu0 %v692
        %v763 = vpop.f32.mrb[0].mxu0
        %v764 = vadd.f32 0.0, %v763
        %v765 = vpop.f32.mrb[0].mxu0
        %766 = vdwg.mxu0
        %v767 = vsel %vm356, %v764, -inf
        %768 = vmax.xlane.f32.xlu0 %v767
        %v769 = vpop.xlane.xlu0 %768
        %v770 = vsub.f32 %v764, %v769
        %v771 = vmul.f32 %v770, 1.442695
        %v772 = vpow.pop %v771
        %v773 = vsel %vm356, %v772, 0.0
        %774 = vadd.xlane.f32.xlu0 %v773
        %v775 = vpop.xlane.xlu0 %774
        %v777 = vsel %vm356, %v772, 0
        %779 = vmatprep.subr.mxu0 0.0
        %780 = vmatpush1.msra.mxu0 %v690
        %781 = vmatprep.subr.mxu0 0.0
        %782 = vmatpush1.msra.mxu0 0.0
        %783 = vmatprep.subr.mxu0 0.0
        %784 = vmatpush1.msra.mxu0 0.0
        %785 = vmatprep.subr.mxu0 0.0
        %786 = vmatpush1.msra.mxu0 0.0
        %787 = vmatprep.subr.mxu0 0.0
        %788 = vmatpush1.msra.mxu0 0.0
        %789 = vmatprep.subr.mxu0 0.0
        %790 = vmatpush1.msra.mxu0 0.0
        %791 = vmatprep.subr.mxu0 0.0
        %792 = vmatpush1.msra.mxu0 0.0
        %793 = vmatprep.subr.mxu0 0.0
        %794 = vmatpush1.msra.mxu0 0.0
        %795 = vmatprep.subr.mxu0 0.0
        %796 = vmatpush1.msra.mxu0 0.0
        %797 = vmatprep.subr.mxu0 0.0
        %798 = vmatpush1.msra.mxu0 0.0
        %799 = vmatprep.subr.mxu0 0.0
        %800 = vmatpush1.msra.mxu0 0.0
        %801 = vmatprep.subr.mxu0 0.0
        %802 = vmatpush1.msra.mxu0 0.0
        %803 = vmatprep.subr.mxu0 0.0
        %804 = vmatpush1.msra.mxu0 0.0
        %805 = vmatprep.subr.mxu0 0.0
        %806 = vmatpush1.msra.mxu0 0.0
        %807 = vmatprep.subr.mxu0 0.0
        %808 = vmatpush1.msra.mxu0 0.0
        %809 = vmatprep.subr.mxu0 0.0
        %810 = vmatpush1.msra.mxu0 0.0
        %811 = vmatprep.subr.mxu0 0.0
        %812 = vmatpush1.msra.mxu0 0.0
        %813 = vmatprep.subr.mxu0 0.0
        %814 = vmatpush1.msra.mxu0 0.0
        %815 = vmatprep.subr.mxu0 0.0
        %816 = vmatpush1.msra.mxu0 0.0
        %817 = vmatprep.subr.mxu0 0.0
        %818 = vmatpush1.msra.mxu0 0.0
        %819 = vmatprep.subr.mxu0 0.0
        %820 = vmatpush1.msra.mxu0 0.0
        %821 = vmatprep.subr.mxu0 0.0
        %822 = vmatpush1.msra.mxu0 0.0
        %823 = vmatprep.subr.mxu0 0.0
        %824 = vmatpush1.msra.mxu0 0.0
        %825 = vmatprep.subr.mxu0 0.0
        %826 = vmatpush1.msra.mxu0 0.0
        %827 = vmatprep.subr.mxu0 0.0
        %828 = vmatpush1.msra.mxu0 0.0
        %829 = vmatprep.subr.mxu0 0.0
        %830 = vmatpush1.msra.mxu0 0.0
        %831 = vmatprep.subr.mxu0 0.0
        %832 = vmatpush1.msra.mxu0 0.0
        %833 = vmatprep.subr.mxu0 0.0
        %834 = vmatpush1.msra.mxu0 0.0
        %835 = vmatprep.subr.mxu0 0.0
        %836 = vmatpush1.msra.mxu0 0.0
        %837 = vmatprep.subr.mxu0 0.0
        %838 = vmatpush1.msra.mxu0 0.0
        %839 = vmatprep.subr.mxu0 0.0
        %840 = vmatpush1.msra.mxu0 0.0
        %841 = vmatprep.subr.mxu0 0.0
        %842 = vmatpush1.msra.mxu0 0.0
        %843 = vmatprep.mubr.f32.mxu0 0.0
        %844 = vmatmul.mubr.f32.gmra.mrb[0].mxu0 %v777
        %v845 = vpop.f32.mrb[0].mxu0
        %v846 = vadd.f32 0.0, %v845
        %v847 = vpop.f32.mrb[0].mxu0
        %848 = vdwg.mxu0
        %v849 = vrcp.pop %v775
        %v850 = vmul.f32 %v846, %v849
        %s851 = scalar_lea.vmem %s293, 24 [#allocation2]
        %v852 = vld [vmem:[%s851] sm:$0xff]
        %v853 = vmul.f32 %v852, 0.35355338
        %s854 = scalar_lea.vmem %s302, 24 [#allocation5]
        %v855 = vld [vmem:[%s854] sm:$0xff]
        %s856 = scalar_lea.vmem %s311, 24 [#allocation7]
        %v857 = vld [vmem:[%s856] sm:$0xff]
        %v859 = vsel %vm356, %v853, 0
        %v862 = vsel %vm356, %v855, 0
        %864 = vmatprep.subr.mxu0 0.0
        %865 = vmatpush1.xpose.msra.mxu0 %v862
        %866 = vmatprep.subr.mxu0 0.0
        %867 = vmatpush1.xpose.msra.mxu0 0.0
        %868 = vmatprep.subr.mxu0 0.0
        %869 = vmatpush1.xpose.msra.mxu0 0.0
        %870 = vmatprep.subr.mxu0 0.0
        %871 = vmatpush1.xpose.msra.mxu0 0.0
        %872 = vmatprep.subr.mxu0 0.0
        %873 = vmatpush1.xpose.msra.mxu0 0.0
        %874 = vmatprep.subr.mxu0 0.0
        %875 = vmatpush1.xpose.msra.mxu0 0.0
        %876 = vmatprep.subr.mxu0 0.0
        %877 = vmatpush1.xpose.msra.mxu0 0.0
        %878 = vmatprep.subr.mxu0 0.0
        %879 = vmatpush1.xpose.msra.mxu0 0.0
        %880 = vmatprep.subr.mxu0 0.0
        %881 = vmatpush1.xpose.msra.mxu0 0.0
        %882 = vmatprep.subr.mxu0 0.0
        %883 = vmatpush1.xpose.msra.mxu0 0.0
        %884 = vmatprep.subr.mxu0 0.0
        %885 = vmatpush1.xpose.msra.mxu0 0.0
        %886 = vmatprep.subr.mxu0 0.0
        %887 = vmatpush1.xpose.msra.mxu0 0.0
        %888 = vmatprep.subr.mxu0 0.0
        %889 = vmatpush1.xpose.msra.mxu0 0.0
        %890 = vmatprep.subr.mxu0 0.0
        %891 = vmatpush1.xpose.msra.mxu0 0.0
        %892 = vmatprep.subr.mxu0 0.0
        %893 = vmatpush1.xpose.msra.mxu0 0.0
        %894 = vmatprep.subr.mxu0 0.0
        %895 = vmatpush1.xpose.msra.mxu0 0.0
        %896 = vmatprep.subr.mxu0 0.0
        %897 = vmatpush1.xpose.msra.mxu0 0.0
        %898 = vmatprep.subr.mxu0 0.0
        %899 = vmatpush1.xpose.msra.mxu0 0.0
        %900 = vmatprep.subr.mxu0 0.0
        %901 = vmatpush1.xpose.msra.mxu0 0.0
        %902 = vmatprep.subr.mxu0 0.0
        %903 = vmatpush1.xpose.msra.mxu0 0.0
        %904 = vmatprep.subr.mxu0 0.0
        %905 = vmatpush1.xpose.msra.mxu0 0.0
        %906 = vmatprep.subr.mxu0 0.0
        %907 = vmatpush1.xpose.msra.mxu0 0.0
        %908 = vmatprep.subr.mxu0 0.0
        %909 = vmatpush1.xpose.msra.mxu0 0.0
        %910 = vmatprep.subr.mxu0 0.0
        %911 = vmatpush1.xpose.msra.mxu0 0.0
        %912 = vmatprep.subr.mxu0 0.0
        %913 = vmatpush1.xpose.msra.mxu0 0.0
        %914 = vmatprep.subr.mxu0 0.0
        %915 = vmatpush1.xpose.msra.mxu0 0.0
        %916 = vmatprep.subr.mxu0 0.0
        %917 = vmatpush1.xpose.msra.mxu0 0.0
        %918 = vmatprep.subr.mxu0 0.0
        %919 = vmatpush1.xpose.msra.mxu0 0.0
        %920 = vmatprep.subr.mxu0 0.0
        %921 = vmatpush1.xpose.msra.mxu0 0.0
        %922 = vmatprep.subr.mxu0 0.0
        %923 = vmatpush1.xpose.msra.mxu0 0.0
        %924 = vmatprep.subr.mxu0 0.0
        %925 = vmatpush1.xpose.msra.mxu0 0.0
        %926 = vmatprep.subr.mxu0 0.0
        %927 = vmatpush1.xpose.msra.mxu0 0.0
        %928 = vmatprep.mubr.f32.mxu0 0.0
        %929 = vmatmul.mubr.f32.gmra.mrb[0].mxu0 %v859
        %v930 = vpop.f32.mrb[0].mxu0
        %v931 = vadd.f32 0.0, %v930
        %v932 = vpop.f32.mrb[0].mxu0
        %933 = vdwg.mxu0
        %v934 = vsel %vm356, %v931, -inf
        %935 = vmax.xlane.f32.xlu0 %v934
        %v936 = vpop.xlane.xlu0 %935
        %v937 = vsub.f32 %v931, %v936
        %v938 = vmul.f32 %v937, 1.442695
        %v939 = vpow.pop %v938
        %v940 = vsel %vm356, %v939, 0.0
        %941 = vadd.xlane.f32.xlu0 %v940
        %v942 = vpop.xlane.xlu0 %941
        %v944 = vsel %vm356, %v939, 0
        %946 = vmatprep.subr.mxu0 0.0
        %947 = vmatpush1.msra.mxu0 %v857
        %948 = vmatprep.subr.mxu0 0.0
        %949 = vmatpush1.msra.mxu0 0.0
        %950 = vmatprep.subr.mxu0 0.0
        %951 = vmatpush1.msra.mxu0 0.0
        %952 = vmatprep.subr.mxu0 0.0
        %953 = vmatpush1.msra.mxu0 0.0
        %954 = vmatprep.subr.mxu0 0.0
        %955 = vmatpush1.msra.mxu0 0.0
        %956 = vmatprep.subr.mxu0 0.0
        %957 = vmatpush1.msra.mxu0 0.0
        %958 = vmatprep.subr.mxu0 0.0
        %959 = vmatpush1.msra.mxu0 0.0
        %960 = vmatprep.subr.mxu0 0.0
        %961 = vmatpush1.msra.mxu0 0.0
        %962 = vmatprep.subr.mxu0 0.0
        %963 = vmatpush1.msra.mxu0 0.0
        %964 = vmatprep.subr.mxu0 0.0
        %965 = vmatpush1.msra.mxu0 0.0
        %966 = vmatprep.subr.mxu0 0.0
        %967 = vmatpush1.msra.mxu0 0.0
        %968 = vmatprep.subr.mxu0 0.0
        %969 = vmatpush1.msra.mxu0 0.0
        %970 = vmatprep.subr.mxu0 0.0
        %971 = vmatpush1.msra.mxu0 0.0
        %972 = vmatprep.subr.mxu0 0.0
        %973 = vmatpush1.msra.mxu0 0.0
        %974 = vmatprep.subr.mxu0 0.0
        %975 = vmatpush1.msra.mxu0 0.0
        %976 = vmatprep.subr.mxu0 0.0
        %977 = vmatpush1.msra.mxu0 0.0
        %978 = vmatprep.subr.mxu0 0.0
        %979 = vmatpush1.msra.mxu0 0.0
        %980 = vmatprep.subr.mxu0 0.0
        %981 = vmatpush1.msra.mxu0 0.0
        %982 = vmatprep.subr.mxu0 0.0
        %983 = vmatpush1.msra.mxu0 0.0
        %984 = vmatprep.subr.mxu0 0.0
        %985 = vmatpush1.msra.mxu0 0.0
        %986 = vmatprep.subr.mxu0 0.0
        %987 = vmatpush1.msra.mxu0 0.0
        %988 = vmatprep.subr.mxu0 0.0
        %989 = vmatpush1.msra.mxu0 0.0
        %990 = vmatprep.subr.mxu0 0.0
        %991 = vmatpush1.msra.mxu0 0.0
        %992 = vmatprep.subr.mxu0 0.0
        %993 = vmatpush1.msra.mxu0 0.0
        %994 = vmatprep.subr.mxu0 0.0
        %995 = vmatpush1.msra.mxu0 0.0
        %996 = vmatprep.subr.mxu0 0.0
        %997 = vmatpush1.msra.mxu0 0.0
        %998 = vmatprep.subr.mxu0 0.0
        %999 = vmatpush1.msra.mxu0 0.0
        %1000 = vmatprep.subr.mxu0 0.0
        %1001 = vmatpush1.msra.mxu0 0.0
        %1002 = vmatprep.subr.mxu0 0.0
        %1003 = vmatpush1.msra.mxu0 0.0
        %1004 = vmatprep.subr.mxu0 0.0
        %1005 = vmatpush1.msra.mxu0 0.0
        %1006 = vmatprep.subr.mxu0 0.0
        %1007 = vmatpush1.msra.mxu0 0.0
        %1008 = vmatprep.subr.mxu0 0.0
        %1009 = vmatpush1.msra.mxu0 0.0
        %1010 = vmatprep.mubr.f32.mxu0 0.0
        %1011 = vmatmul.mubr.f32.gmra.mrb[0].mxu0 %v944
        %v1012 = vpop.f32.mrb[0].mxu0
        %v1013 = vadd.f32 0.0, %v1012
        %v1014 = vpop.f32.mrb[0].mxu0
        %1015 = vdwg.mxu0
        %v1016 = vrcp.pop %v942
        %v1017 = vmul.f32 %v1013, %v1016
        %1019 = vrot.lane.b32.xlu0 %v683, 8
        %v1020 = vpop.permute.xlu0 %1019
        %1023 = vrot.lane.b32.xlu0 %v850, 16
        %v1024 = vpop.permute.xlu0 %1023
        %1027 = vrot.lane.b32.xlu0 %v1017, 24
        %v1028 = vpop.permute.xlu0 %1027
        %v1030 = vsel %vm356, %v516, %v1020
        %vm1031 = vcmask 130048
        %v1032 = vsel %vm1031, %v1030, %v1024
        %vm1033 = vcmask 195584
        %v1034 = vsel %vm1033, %v1032, %v1028
        %v1035 = vld [vmem:[#allocation8] sm:$0xff]
        %v1036 = vld [vmem:[#allocation8 + $0x8] sm:$0xff]
        %v1037 = vld [vmem:[#allocation8 + $0x10] sm:$0xff]
        %v1038 = vld [vmem:[#allocation8 + $0x18] sm:$0xff]
        %v1039 = vld [vmem:[%s4] sm:$0x1]
        %v1041 = vlaneseq
        %v1042 = vshrl.u32 %v1041, 7
        %v1043 = vsub.s32 0, %v1042
        %v1044 = vrot.slane %v1039, %v1043
        %vm1046 = vcmask 261120
        %v1048 = vsel %vm1046, %v1034, 0
        %1050 = vmatprep.subr.mxu0 0.0
        %1051 = vmatpush1.msra.mxu0 %v1035
        %1052 = vmatprep.subr.mxu0 0.0
        %1053 = vmatpush1.msra.mxu0 %v1036
        %1054 = vmatprep.subr.mxu0 0.0
        %1055 = vmatpush1.msra.mxu0 %v1037
        %1056 = vmatprep.subr.mxu0 0.0
        %1057 = vmatpush1.msra.mxu0 %v1038
        %1058 = vmatprep.subr.mxu0 0.0
        %1059 = vmatpush1.msra.mxu0 0.0
        %1060 = vmatprep.subr.mxu0 0.0
        %1061 = vmatpush1.msra.mxu0 0.0
        %1062 = vmatprep.subr.mxu0 0.0
        %1063 = vmatpush1.msra.mxu0 0.0
        %1064 = vmatprep.subr.mxu0 0.0
        %1065 = vmatpush1.msra.mxu0 0.0
        %1066 = vmatprep.subr.mxu0 0.0
        %1067 = vmatpush1.msra.mxu0 0.0
        %1068 = vmatprep.subr.mxu0 0.0
        %1069 = vmatpush1.msra.mxu0 0.0
        %1070 = vmatprep.subr.mxu0 0.0
        %1071 = vmatpush1.msra.mxu0 0.0
        %1072 = vmatprep.subr.mxu0 0.0
        %1073 = vmatpush1.msra.mxu0 0.0
        %1074 = vmatprep.subr.mxu0 0.0
        %1075 = vmatpush1.msra.mxu0 0.0
        %1076 = vmatprep.subr.mxu0 0.0
        %1077 = vmatpush1.msra.mxu0 0.0
        %1078 = vmatprep.subr.mxu0 0.0
        %1079 = vmatpush1.msra.mxu0 0.0
        %1080 = vmatprep.subr.mxu0 0.0
        %1081 = vmatpush1.msra.mxu0 0.0
        %1082 = vmatprep.subr.mxu0 0.0
        %1083 = vmatpush1.msra.mxu0 0.0
        %1084 = vmatprep.subr.mxu0 0.0
        %1085 = vmatpush1.msra.mxu0 0.0
        %1086 = vmatprep.subr.mxu0 0.0
        %1087 = vmatpush1.msra.mxu0 0.0
        %1088 = vmatprep.subr.mxu0 0.0
        %1089 = vmatpush1.msra.mxu0 0.0
        %1090 = vmatprep.subr.mxu0 0.0
        %1091 = vmatpush1.msra.mxu0 0.0
        %1092 = vmatprep.subr.mxu0 0.0
        %1093 = vmatpush1.msra.mxu0 0.0
        %1094 = vmatprep.subr.mxu0 0.0
        %1095 = vmatpush1.msra.mxu0 0.0
        %1096 = vmatprep.subr.mxu0 0.0
        %1097 = vmatpush1.msra.mxu0 0.0
        %1098 = vmatprep.subr.mxu0 0.0
        %1099 = vmatpush1.msra.mxu0 0.0
        %1100 = vmatprep.subr.mxu0 0.0
        %1101 = vmatpush1.msra.mxu0 0.0
        %1102 = vmatprep.subr.mxu0 0.0
        %1103 = vmatpush1.msra.mxu0 0.0
        %1104 = vmatprep.subr.mxu0 0.0
        %1105 = vmatpush1.msra.mxu0 0.0
        %1106 = vmatprep.subr.mxu0 0.0
        %1107 = vmatpush1.msra.mxu0 0.0
        %1108 = vmatprep.subr.mxu0 0.0
        %1109 = vmatpush1.msra.mxu0 0.0
        %1110 = vmatprep.subr.mxu0 0.0
        %1111 = vmatpush1.msra.mxu0 0.0
        %1112 = vmatprep.subr.mxu0 0.0
        %1113 = vmatpush1.msra.mxu0 0.0
        %1114 = vmatprep.mubr.f32.mxu0 0.0
        %1115 = vmatmul.mubr.f32.gmra.mrb[0].mxu0 %v1048
        %v1116 = vpop.f32.mrb[0].mxu0
        %v1117 = vadd.f32 %v1044, %v1116
        %v1118 = vpop.f32.mrb[0].mxu0
        %1119 = vdwg.mxu0
        %1120 = vst.msk [vmem:[%s351] sm:$0xff] %vm1046, %v1117
        %s1121 = sand.u32 %s170, 1
        %s1122 = scalar_lea.sflag [#allocation4], %s1121
        %s1123 = sand.u32 %s170, 1
        %s1124 = smul.addr %s1123, 8
        %s1125 = scalar_lea.vmem [#allocation10], %s1124
        // Predicated region
        $region57: #{tpu_custom_call.1} parent=39 // pred_check
          %p1126 = pneg %p180
        $region58: #{tpu_custom_call.1} parent=39 // pred_check_branch
          %1128 = sbr.rel (%p1126) target = $region60
        $region59: #{tpu_custom_call.1} parent=39 // pred_region
          %s1130 = ssub.s32 128, 128
          %1131 = vsyncadd %s1122, %s1130
          %s1132 = sadd.s32 %s31, %s30
          %s1133 = smul.addr %s1132, 128
          %s1134 = scalar_lea.hbm %s5, %s1133
          %s1136 = sshll.u32 %s1125, 4
          %s1137 = int_to_ptr.vmem [resolvable:$true] %s1136
          %1139 = dma.vmem_to_hbm [thread:$0]  %s1137, 128, %s1134, %s1122
        $region60: #{tpu_custom_call.1} parent=39 // pred_fallthru
          _
      $region40: #{tpu_custom_call.1} parent=5 // pred_fallthru
        _
      %p1140 = scmp.le.s32.totalorder 2, %s21
      // Predicated region
      $region61: #{tpu_custom_call.1} parent=5 // pred_check
        %p1141 = pneg %p1140
      $region62: #{tpu_custom_call.1} parent=5 // pred_check_branch
        %1143 = sbr.rel (%p1141) target = $region64
      $region63: #{tpu_custom_call.1} parent=5 // pred_region
        %s1144 = ssub.s32 %s21, 2
        // Predicated region
        $region65: #{tpu_custom_call.1} parent=63 // pred_check
          %p1145 = pneg %p186
        $region66: #{tpu_custom_call.1} parent=63 // pred_check_branch
          %1147 = sbr.rel (%p1145) target = $region68
        $region67: #{tpu_custom_call.1} parent=63 // pred_region
          %s1148 = sand.u32 %s171, 1
          %s1149 = scalar_lea.sflag [#allocation4], %s1148
          %s1150 = sand.u32 %s171, 1
          %s1151 = smul.addr %s1150, 8
          %s1152 = scalar_lea.vmem [#allocation10], %s1151
          %1153 = dma.done %s1149, 128
        $region68: #{tpu_custom_call.1} parent=63 // pred_fallthru
          _
      $region64: #{tpu_custom_call.1} parent=5 // pred_fallthru
        _
    $region6: #{tpu_custom_call.1} parent=1 // loop_footer
      %s25 = sadd.s32 1, %s21
    $region7: #{tpu_custom_call.1} parent=1 // loop_footer_branch
      %20 = sbr.rel target = $region3
    $region8: #{tpu_custom_call.1} parent=1 // loop_exit
      _
    %1154 = vsyncpa [#allocation3], 1
    %s1155 = scalar_lea.sflag [#allocation3], 1
    %1156 = vsyncpa %s1155, 1
    %1157 = vsyncpa [#allocation6], 1
    %s1158 = scalar_lea.sflag [#allocation6], 1
    %1159 = vsyncpa %s1158, 1
    %1160 = vsyncpa [#allocation9], 1
    %1161 = vsyncpa [#allocation4], 1
    %s1162 = scalar_lea.sflag [#allocation4], 1
    %1163 = vsyncpa %s1162, 1

</llo_original>
